<compile_context>
chip_gen: v6e
topology: v6e:2x2x1
jax: 0.10.0
libtpu: 0.0.40
codegen_flags: <defaults>
</compile_context>

<pallas_src>
import jax
import jax.numpy as jnp
from jax.experimental import pallas as pl
from jax.experimental.pallas import tpu as pltpu


# ----------------------------- Pallas kernel -------------------------------

def _factored_lstm_kernel(x_ref, h0_ref, c0_ref,
                          vw_ref, vb_ref, sw_ref, sb_ref,
                          uw_ref, ww_ref, gb_ref,
                          cw_ref, cb_ref,
                          out_ref, h_scr, c_scr):
    t = pl.program_id(1)

    @pl.when(t == 0)
    def _():
        # Fresh state for every batch tile at the first time step.
        h_scr[...] = h0_ref[...]
        c_scr[...] = c0_ref[...]

    hdim = h_scr.shape[-1]
    x = x_ref[0]                      # (TB, E)   embedded token / feature
    h = h_scr[...]                    # (TB, H)
    c = c_scr[...]                    # (TB, H)

    # Factored input path: V -> mode-specific S -> U (all 128-wide MXU matmuls)
    xv = jnp.dot(x, vw_ref[...], preferred_element_type=jnp.float32) + vb_ref[...]
    xs = jnp.dot(xv, sw_ref[...], preferred_element_type=jnp.float32) + sb_ref[...]
    xu = jnp.dot(xs, uw_ref[...], preferred_element_type=jnp.float32)
    hw = jnp.dot(h, ww_ref[...], preferred_element_type=jnp.float32)
    pre = xu + hw + gb_ref[...]       # (TB, 4H): [ i | f | o | c~ ]

    i_t = jax.nn.sigmoid(pre[:, 0 * hdim:1 * hdim])
    f_t = jax.nn.sigmoid(pre[:, 1 * hdim:2 * hdim])
    o_t = jax.nn.sigmoid(pre[:, 2 * hdim:3 * hdim])
    c_tilda = jnp.tanh(pre[:, 3 * hdim:4 * hdim])

    c_new = f_t * c + i_t * c_tilda
    h_new = o_t * c_new               # NOTE: reference uses o_t * c_t (no tanh) — preserved.
    h_scr[...] = h_new
    c_scr[...] = c_new

    logits = jnp.dot(h_new, cw_ref[...], preferred_element_type=jnp.float32) + cb_ref[...]
    out_ref[0] = logits.astype(out_ref.dtype)


# --------------------------- weight packing (host) --------------------------

_GATES = ("i", "f", "o", "c")
_MODE_TAG = {"factual": "f", "humorous": "h", "romantic": "r"}


def _block_diag(mats):
    rows = sum(m.shape[0] for m in mats)
    cols = sum(m.shape[1] for m in mats)
    out = jnp.zeros((rows, cols), mats[0].dtype)
    r = c = 0
    for m in mats:
        out = out.at[r:r + m.shape[0], c:c + m.shape[1]].set(m)
        r += m.shape[0]
        c += m.shape[1]
    return out


def _pack_params(params, mode):
    """PyTorch-convention (out,in) weights -> packed lane-dense matrices."""
    mt = _MODE_TAG[mode]
    vw = jnp.concatenate([params[f"V_{g}_w"].T for g in _GATES], axis=1)     # (E, 4F)
    vb = jnp.concatenate([params[f"V_{g}_b"] for g in _GATES]).reshape(1, -1)
    sw = _block_diag([params[f"S_{mt}{g}_w"].T for g in _GATES])             # (4F, 4F)
    sb = jnp.concatenate([params[f"S_{mt}{g}_b"] for g in _GATES]).reshape(1, -1)
    uw = _block_diag([params[f"U_{g}_w"].T for g in _GATES])                 # (4F, 4H)
    ww = jnp.concatenate([params[f"W_{g}_w"].T for g in _GATES], axis=1)     # (H, 4H)
    gb = (jnp.concatenate([params[f"U_{g}_b"] for g in _GATES])
          + jnp.concatenate([params[f"W_{g}_b"] for g in _GATES])).reshape(1, -1)
    cw = params["C_w"].T                                                     # (H, V)
    cb = params["C_b"].reshape(1, -1)
    return vw, vb, sw, sb, uw, ww, gb, cw, cb


# ------------------------------ JAX wrapper ---------------------------------

def factored_lstm_forward(params, captions, features, h0, c0, mode="factual"):
    """FactoredLSTM.forward: embed -> (prepend features) -> LSTM recurrence -> logits.

    captions: (B, L) int32, features: (B, E), h0/c0: (B, H) uniform init.
    Returns (B, T, vocab) with T = embedded_len - 1.
    """
    if mode not in _MODE_TAG:
        raise ValueError("mode name wrong!")

    # nn.Embedding lookup: plain gather on host (tiny table at demo scale).
    embedded = jnp.take(params["B_w"], captions, axis=0)          # (B, L, E)
    if mode == "factual":
        if features is None:
            raise ValueError("features is None!")
        embedded = jnp.concatenate([features[:, None, :], embedded], axis=1)

    batch, total_len, emb_dim = embedded.shape
    n_steps = total_len - 1
    hid = params["W_i_w"].shape[0]
    fac = params["U_i_w"].shape[1]
    vocab = params["C_w"].shape[0]
    f4, h4 = 4 * fac, 4 * hid

    vw, vb, sw, sb, uw, ww, gb, cw, cb = _pack_params(params, mode)

    # Time-major input slab: per-step block is (1, B, E) -> trailing dims are
    # full array dims (lane-dense / layout friendly).
    x_tm = jnp.transpose(embedded[:, :n_steps, :], (1, 0, 2))     # (T, B, E)

    # One batch tile at demo scale; for large B, tile batch with TB % 8 == 0
    # so the second-minor block dim stays layout-legal.
    tb = batch
    nb = 1

    per_step_flops = 2 * tb * (emb_dim * f4 + f4 * f4 + f4 * h4 + hid * h4 + hid * vocab)
    cost = pl.CostEstimate(
        flops=nb * n_steps * per_step_flops,
        transcendentals=nb * n_steps * tb * h4,
        bytes_accessed=4 * (x_tm.size + n_steps * batch * vocab + 2 * batch * hid
                            + vw.size + vb.size + sw.size + sb.size
                            + uw.size + ww.size + gb.size + cw.size + cb.size),
    )

    out_tm = pl.pallas_call(
        _factored_lstm_kernel,
        out_shape=jax.ShapeDtypeStruct((n_steps, batch, vocab), jnp.float32),
        grid_spec=pltpu.PrefetchScalarGridSpec(
            num_scalar_prefetch=0,
            grid=(nb, n_steps),                                   # (batch, time)
            in_specs=[
                pl.BlockSpec((1, tb, emb_dim), lambda b, t: (t, b, 0)),   # x_t
                pl.BlockSpec((tb, hid), lambda b, t: (b, 0)),             # h0
                pl.BlockSpec((tb, hid), lambda b, t: (b, 0)),             # c0
                pl.BlockSpec((emb_dim, f4), lambda b, t: (0, 0)),         # Vcat
                pl.BlockSpec((1, f4), lambda b, t: (0, 0)),               # Vcat bias
                pl.BlockSpec((f4, f4), lambda b, t: (0, 0)),              # S block-diag
                pl.BlockSpec((1, f4), lambda b, t: (0, 0)),               # S bias
                pl.BlockSpec((f4, h4), lambda b, t: (0, 0)),              # U block-diag
                pl.BlockSpec((hid, h4), lambda b, t: (0, 0)),             # Wcat
                pl.BlockSpec((1, h4), lambda b, t: (0, 0)),               # U+W bias
                pl.BlockSpec((hid, vocab), lambda b, t: (0, 0)),          # C^T
                pl.BlockSpec((1, vocab), lambda b, t: (0, 0)),            # C bias
            ],
            out_specs=pl.BlockSpec((1, tb, vocab), lambda b, t: (t, b, 0)),
            scratch_shapes=[
                pltpu.VMEM((tb, hid), jnp.float32),   # h_t carried across time
                pltpu.VMEM((tb, hid), jnp.float32),   # c_t carried across time
            ],
        ),
        compiler_params=pltpu.CompilerParams(
            dimension_semantics=("parallel", "arbitrary"),
            vmem_limit_bytes=32 * 1024 * 1024,
        ),
        cost_estimate=cost,
    )(x_tm, h0, c0, vw, vb, sw, sb, uw, ww, gb, cw, cb)

    return jnp.transpose(out_tm, (1, 0, 2))                       # (B, T, V)


# --------------------------- pure-JAX reference ------------------------------

def factored_lstm_reference(params, captions, features, h0, c0, mode="factual"):
    emb = jnp.take(params["B_w"], captions, axis=0)
    if mode == "factual":
        emb = jnp.concatenate([features[:, None, :], emb], axis=1)
    mt = _MODE_TAG[mode]

    def lin(name, x):
        return x @ params[f"{name}_w"].T + params[f"{name}_b"]

    h, c = h0, c0
    outs = []
    for t in range(emb.shape[1] - 1):
        x = emb[:, t, :]
        gi = lin(f"S_{mt}i", lin("V_i", x))
        gf = lin(f"S_{mt}f", lin("V_f", x))
        go = lin(f"S_{mt}o", lin("V_o", x))
        gc = lin(f"S_{mt}c", lin("V_c", x))
        i_t = jax.nn.sigmoid(lin("U_i", gi) + lin("W_i", h))
        f_t = jax.nn.sigmoid(lin("U_f", gf) + lin("W_f", h))
        o_t = jax.nn.sigmoid(lin("U_o", go) + lin("W_o", h))
        c_til = jnp.tanh(lin("U_c", gc) + lin("W_c", h))
        c = f_t * c + i_t * c_til
        h = o_t * c
        outs.append(lin("C", h))
    return jnp.stack(outs, axis=1)


# ------------------------------ param init -----------------------------------

def init_params(key, emb_dim, hidden_dim, factored_dim, vocab_size):
    shapes = {"B_w": (vocab_size, emb_dim),
              "C_w": (vocab_size, hidden_dim), "C_b": (vocab_size,)}
    for g in _GATES:
        shapes[f"U_{g}_w"] = (hidden_dim, factored_dim)
        shapes[f"U_{g}_b"] = (hidden_dim,)
        shapes[f"V_{g}_w"] = (factored_dim, emb_dim)
        shapes[f"V_{g}_b"] = (factored_dim,)
        shapes[f"W_{g}_w"] = (hidden_dim, hidden_dim)
        shapes[f"W_{g}_b"] = (hidden_dim,)
        for m in ("f", "h", "r"):
            shapes[f"S_{m}{g}_w"] = (factored_dim, factored_dim)
            shapes[f"S_{m}{g}_b"] = (factored_dim,)
    names = sorted(shapes)
    keys = jax.random.split(key, len(names))
    return {n: 0.1 * jax.random.normal(k, shapes[n], jnp.float32)
            for n, k in zip(names, keys)}


# --------------------------------- main --------------------------------------

if __name__ == "__main__":
    EMB_DIM, HIDDEN_DIM, FACTORED_DIM, VOCAB = 32, 32, 32, 128
    BATCH, MAX_LEN = 2, 8

    root = jax.random.PRNGKey(0)
    kp, kc, kf, kh, kcell = jax.random.split(root, 5)
    params = init_params(kp, EMB_DIM, HIDDEN_DIM, FACTORED_DIM, VOCAB)
    captions = jax.random.randint(kc, (BATCH, MAX_LEN), 0, VOCAB, dtype=jnp.int32)
    features = jax.random.normal(kf, (BATCH, EMB_DIM), jnp.float32)
    # Reference does nn.init.uniform on uninitialized h/c -> U[0,1); made explicit.
    h0 = jax.random.uniform(kh, (BATCH, HIDDEN_DIM), jnp.float32)
    c0 = jax.random.uniform(kcell, (BATCH, HIDDEN_DIM), jnp.float32)

    fwd = jax.jit(factored_lstm_forward, static_argnames=("mode",))
    out = fwd(params, captions, features, h0, c0, mode="factual")
    out = jax.block_until_ready(out)

    assert out.shape == (BATCH, MAX_LEN, VOCAB), out.shape   # T = (L+1) - 1 = L
    assert out.dtype == jnp.float32

    ref = factored_lstm_reference(params, captions, features, h0, c0, mode="factual")
    max_err = float(jnp.max(jnp.abs(out - ref)))
    assert max_err < 5e-2, f"mismatch vs pure-JAX reference: {max_err}"

    # TODO(synk): sample() beam search is host-side control flow (sorting,
    # variable-length candidate lists) and is not expressed as a kernel.
    print("KERNEL_OK")
</pallas_src>

<mosaic_0001>
module attributes {stable_mosaic.version = 11 : i64} {
  func.func @_factored_lstm_kernel(%arg0: i32, %arg1: i32, %arg2: memref<1x2x32xf32, #tpu.memory_space<vmem>>, %arg3: memref<2x32xf32, #tpu.memory_space<vmem>>, %arg4: memref<2x32xf32, #tpu.memory_space<vmem>>, %arg5: memref<32x128xf32, #tpu.memory_space<vmem>>, %arg6: memref<1x128xf32, #tpu.memory_space<vmem>>, %arg7: memref<128x128xf32, #tpu.memory_space<vmem>>, %arg8: memref<1x128xf32, #tpu.memory_space<vmem>>, %arg9: memref<128x128xf32, #tpu.memory_space<vmem>>, %arg10: memref<32x128xf32, #tpu.memory_space<vmem>>, %arg11: memref<1x128xf32, #tpu.memory_space<vmem>>, %arg12: memref<32x128xf32, #tpu.memory_space<vmem>>, %arg13: memref<1x128xf32, #tpu.memory_space<vmem>>, %arg14: memref<1x2x128xf32, #tpu.memory_space<vmem>>, %arg15: memref<2x32xf32, #tpu.memory_space<vmem>>, %arg16: memref<2x32xf32, #tpu.memory_space<vmem>>) attributes {dimension_semantics = [#tpu.dimension_semantics<parallel>, #tpu.dimension_semantics<arbitrary>], iteration_bounds = array<i64: 1, 8>, scalar_prefetch = 0 : i64, scratch_operands = 2 : i64, tpu.core_type = #tpu.core_type<tc>, window_params = [{transform_indices = @transform_0, window_bounds = array<i64: 1, 2, 32>}, {transform_indices = @transform_1, window_bounds = array<i64: 2, 32>}, {transform_indices = @transform_2, window_bounds = array<i64: 2, 32>}, {pipeline_mode = #tpu.pipeline_mode<synchronous>, transform_indices = @transform_3, window_bounds = array<i64: 32, 128>}, {pipeline_mode = #tpu.pipeline_mode<synchronous>, transform_indices = @transform_4, window_bounds = array<i64: 1, 128>}, {pipeline_mode = #tpu.pipeline_mode<synchronous>, transform_indices = @transform_5, window_bounds = array<i64: 128, 128>}, {pipeline_mode = #tpu.pipeline_mode<synchronous>, transform_indices = @transform_6, window_bounds = array<i64: 1, 128>}, {pipeline_mode = #tpu.pipeline_mode<synchronous>, transform_indices = @transform_7, window_bounds = array<i64: 128, 128>}, {pipeline_mode = #tpu.pipeline_mode<synchronous>, transform_indices = @transform_8, window_bounds = array<i64: 32, 128>}, {pipeline_mode = #tpu.pipeline_mode<synchronous>, transform_indices = @transform_9, window_bounds = array<i64: 1, 128>}, {pipeline_mode = #tpu.pipeline_mode<synchronous>, transform_indices = @transform_10, window_bounds = array<i64: 32, 128>}, {pipeline_mode = #tpu.pipeline_mode<synchronous>, transform_indices = @transform_11, window_bounds = array<i64: 1, 128>}, {transform_indices = @transform_12, window_bounds = array<i64: 1, 2, 128>}]} {
    %c0_i32 = arith.constant 0 : i32
    %0 = arith.cmpi eq, %arg1, %c0_i32 : i32
    %1 = arith.extui %0 : i1 to i32
    %c0_i32_0 = arith.constant 0 : i32
    %2 = arith.cmpi ne, %1, %c0_i32_0 : i32
    scf.if %2 {
      %c0_39 = arith.constant 0 : index
      %c0_40 = arith.constant 0 : index
      %59 = vector.load %arg3[%c0_39, %c0_40] : memref<2x32xf32, #tpu.memory_space<vmem>>, vector<2x32xf32>
      %c0_41 = arith.constant 0 : index
      %c0_42 = arith.constant 0 : index
      %60 = vector.load %arg15[%c0_41, %c0_42] : memref<2x32xf32, #tpu.memory_space<vmem>>, vector<2x32xf32>
      tpu.vector_store %arg15[%c0_41, %c0_42], %59 {strides = array<i32>} : memref<2x32xf32, #tpu.memory_space<vmem>>, vector<2x32xf32>,
      %c0_43 = arith.constant 0 : index
      %c0_44 = arith.constant 0 : index
      %61 = vector.load %arg4[%c0_43, %c0_44] : memref<2x32xf32, #tpu.memory_space<vmem>>, vector<2x32xf32>
      %c0_45 = arith.constant 0 : index
      %c0_46 = arith.constant 0 : index
      %62 = vector.load %arg16[%c0_45, %c0_46] : memref<2x32xf32, #tpu.memory_space<vmem>>, vector<2x32xf32>
      tpu.vector_store %arg16[%c0_45, %c0_46], %61 {strides = array<i32>} : memref<2x32xf32, #tpu.memory_space<vmem>>, vector<2x32xf32>,
    } else {
    }
    %c0 = arith.constant 0 : index
    %c0_1 = arith.constant 0 : index
    %c0_2 = arith.constant 0 : index
    %3 = vector.load %arg2[%c0, %c0_1, %c0_2] : memref<1x2x32xf32, #tpu.memory_space<vmem>>, vector<1x2x32xf32>
    %4 = vector.shape_cast %3 : vector<1x2x32xf32> to vector<2x32xf32>
    %c0_3 = arith.constant 0 : index
    %c0_4 = arith.constant 0 : index
    %5 = vector.load %arg15[%c0_3, %c0_4] : memref<2x32xf32, #tpu.memory_space<vmem>>, vector<2x32xf32>
    %c0_5 = arith.constant 0 : index
    %c0_6 = arith.constant 0 : index
    %6 = vector.load %arg16[%c0_5, %c0_6] : memref<2x32xf32, #tpu.memory_space<vmem>>, vector<2x32xf32>
    %c0_7 = arith.constant 0 : index
    %c0_8 = arith.constant 0 : index
    %7 = vector.load %arg5[%c0_7, %c0_8] : memref<32x128xf32, #tpu.memory_space<vmem>>, vector<32x128xf32>
    %cst = arith.constant dense<0.000000e+00> : vector<2x128xf32>
    %8 = tpu.matmul %4, %7, %cst {dimension_numbers = #tpu.dot_dimension_numbers<[1], [0], [0], [1], [0, 0, 1, 1], [], []>} : vector<2x32xf32>, vector<32x128xf32>, vector<2x128xf32> -> vector<2x128xf32>
    %c0_9 = arith.constant 0 : index
    %c0_10 = arith.constant 0 : index
    %9 = vector.load %arg6[%c0_9, %c0_10] : memref<1x128xf32, #tpu.memory_space<vmem>>, vector<1x128xf32>
    %10 = vector.broadcast %9 : vector<1x128xf32> to vector<2x128xf32>
    %11 = arith.addf %8, %10 : vector<2x128xf32>
    %c0_11 = arith.constant 0 : index
    %c0_12 = arith.constant 0 : index
    %12 = vector.load %arg7[%c0_11, %c0_12] : memref<128x128xf32, #tpu.memory_space<vmem>>, vector<128x128xf32>
    %cst_13 = arith.constant dense<0.000000e+00> : vector<2x128xf32>
    %13 = tpu.matmul %11, %12, %cst_13 {dimension_numbers = #tpu.dot_dimension_numbers<[1], [0], [0], [1], [0, 0, 1, 1], [], []>} : vector<2x128xf32>, vector<128x128xf32>, vector<2x128xf32> -> vector<2x128xf32>
    %c0_14 = arith.constant 0 : index
    %c0_15 = arith.constant 0 : index
    %14 = vector.load %arg8[%c0_14, %c0_15] : memref<1x128xf32, #tpu.memory_space<vmem>>, vector<1x128xf32>
    %15 = vector.broadcast %14 : vector<1x128xf32> to vector<2x128xf32>
    %16 = arith.addf %13, %15 : vector<2x128xf32>
    %c0_16 = arith.constant 0 : index
    %c0_17 = arith.constant 0 : index
    %17 = vector.load %arg9[%c0_16, %c0_17] : memref<128x128xf32, #tpu.memory_space<vmem>>, vector<128x128xf32>
    %cst_18 = arith.constant dense<0.000000e+00> : vector<2x128xf32>
    %18 = tpu.matmul %16, %17, %cst_18 {dimension_numbers = #tpu.dot_dimension_numbers<[1], [0], [0], [1], [0, 0, 1, 1], [], []>} : vector<2x128xf32>, vector<128x128xf32>, vector<2x128xf32> -> vector<2x128xf32>
    %c0_19 = arith.constant 0 : index
    %c0_20 = arith.constant 0 : index
    %19 = vector.load %arg10[%c0_19, %c0_20] : memref<32x128xf32, #tpu.memory_space<vmem>>, vector<32x128xf32>
    %cst_21 = arith.constant dense<0.000000e+00> : vector<2x128xf32>
    %20 = tpu.matmul %5, %19, %cst_21 {dimension_numbers = #tpu.dot_dimension_numbers<[1], [0], [0], [1], [0, 0, 1, 1], [], []>} : vector<2x32xf32>, vector<32x128xf32>, vector<2x128xf32> -> vector<2x128xf32>
    %21 = arith.addf %18, %20 : vector<2x128xf32>
    %c0_22 = arith.constant 0 : index
    %c0_23 = arith.constant 0 : index
    %22 = vector.load %arg11[%c0_22, %c0_23] : memref<1x128xf32, #tpu.memory_space<vmem>>, vector<1x128xf32>
    %23 = vector.broadcast %22 : vector<1x128xf32> to vector<2x128xf32>
    %24 = arith.addf %21, %23 : vector<2x128xf32>
    %25 = vector.extract_strided_slice %24 {offsets = [0, 0], sizes = [2, 32], strides = [1, 1]} : vector<2x128xf32> to vector<2x32xf32>
    %26 = arith.negf %25 : vector<2x32xf32>
    %27 = math.exp %26 : vector<2x32xf32>
    %cst_24 = arith.constant 1.000000e+00 : f32
    %28 = vector.broadcast %cst_24 : f32 to vector<2x32xf32>
    %29 = arith.addf %28, %27 : vector<2x32xf32>
    %30 = arith.divf %28, %29 : vector<2x32xf32>
    %31 = vector.extract_strided_slice %24 {offsets = [0, 32], sizes = [2, 32], strides = [1, 1]} : vector<2x128xf32> to vector<2x32xf32>
    %32 = arith.negf %31 : vector<2x32xf32>
    %33 = math.exp %32 : vector<2x32xf32>
    %cst_25 = arith.constant 1.000000e+00 : f32
    %34 = vector.broadcast %cst_25 : f32 to vector<2x32xf32>
    %35 = arith.addf %34, %33 : vector<2x32xf32>
    %36 = arith.divf %34, %35 : vector<2x32xf32>
    %37 = vector.extract_strided_slice %24 {offsets = [0, 64], sizes = [2, 32], strides = [1, 1]} : vector<2x128xf32> to vector<2x32xf32>
    %38 = arith.negf %37 : vector<2x32xf32>
    %39 = math.exp %38 : vector<2x32xf32>
    %cst_26 = arith.constant 1.000000e+00 : f32
    %40 = vector.broadcast %cst_26 : f32 to vector<2x32xf32>
    %41 = arith.addf %40, %39 : vector<2x32xf32>
    %42 = arith.divf %40, %41 : vector<2x32xf32>
    %43 = vector.extract_strided_slice %24 {offsets = [0, 96], sizes = [2, 32], strides = [1, 1]} : vector<2x128xf32> to vector<2x32xf32>
    %44 = math.tanh %43 : vector<2x32xf32>
    %45 = arith.mulf %36, %6 : vector<2x32xf32>
    %46 = arith.mulf %30, %44 : vector<2x32xf32>
    %47 = arith.addf %45, %46 : vector<2x32xf32>
    %48 = arith.mulf %42, %47 : vector<2x32xf32>
    %c0_27 = arith.constant 0 : index
    %c0_28 = arith.constant 0 : index
    %49 = vector.load %arg15[%c0_27, %c0_28] : memref<2x32xf32, #tpu.memory_space<vmem>>, vector<2x32xf32>
    tpu.vector_store %arg15[%c0_27, %c0_28], %48 {strides = array<i32>} : memref<2x32xf32, #tpu.memory_space<vmem>>, vector<2x32xf32>,
    %c0_29 = arith.constant 0 : index
    %c0_30 = arith.constant 0 : index
    %50 = vector.load %arg16[%c0_29, %c0_30] : memref<2x32xf32, #tpu.memory_space<vmem>>, vector<2x32xf32>
    tpu.vector_store %arg16[%c0_29, %c0_30], %47 {strides = array<i32>} : memref<2x32xf32, #tpu.memory_space<vmem>>, vector<2x32xf32>,
    %c0_31 = arith.constant 0 : index
    %c0_32 = arith.constant 0 : index
    %51 = vector.load %arg12[%c0_31, %c0_32] : memref<32x128xf32, #tpu.memory_space<vmem>>, vector<32x128xf32>
    %cst_33 = arith.constant dense<0.000000e+00> : vector<2x128xf32>
    %52 = tpu.matmul %48, %51, %cst_33 {dimension_numbers = #tpu.dot_dimension_numbers<[1], [0], [0], [1], [0, 0, 1, 1], [], []>} : vector<2x32xf32>, vector<32x128xf32>, vector<2x128xf32> -> vector<2x128xf32>
    %c0_34 = arith.constant 0 : index
    %c0_35 = arith.constant 0 : index
    %53 = vector.load %arg13[%c0_34, %c0_35] : memref<1x128xf32, #tpu.memory_space<vmem>>, vector<1x128xf32>
    %54 = vector.broadcast %53 : vector<1x128xf32> to vector<2x128xf32>
    %55 = arith.addf %52, %54 : vector<2x128xf32>
    %c0_36 = arith.constant 0 : index
    %c0_37 = arith.constant 0 : index
    %c0_38 = arith.constant 0 : index
    %56 = vector.load %arg14[%c0_36, %c0_37, %c0_38] : memref<1x2x128xf32, #tpu.memory_space<vmem>>, vector<1x2x128xf32>
    %57 = vector.shape_cast %56 : vector<1x2x128xf32> to vector<2x128xf32>
    %58 = vector.shape_cast %55 : vector<2x128xf32> to vector<1x2x128xf32>
    tpu.vector_store %arg14[%c0_36, %c0_37, %c0_38], %58 {strides = array<i32>} : memref<1x2x128xf32, #tpu.memory_space<vmem>>, vector<1x2x128xf32>,
    return
  }
  func.func @transform_0(%arg0: i32, %arg1: i32) -> (i32, i32, i32) {
    %c0_i32 = arith.constant 0 : i32
    %c0_i32_0 = arith.constant 0 : i32
    return %arg1, %arg0, %c0_i32 : i32, i32, i32
  }
  func.func @transform_1(%arg0: i32, %arg1: i32) -> (i32, i32) {
    %c0_i32 = arith.constant 0 : i32
    %c0_i32_0 = arith.constant 0 : i32
    return %arg0, %c0_i32 : i32, i32
  }
  func.func @transform_2(%arg0: i32, %arg1: i32) -> (i32, i32) {
    %c0_i32 = arith.constant 0 : i32
    %c0_i32_0 = arith.constant 0 : i32
    return %arg0, %c0_i32 : i32, i32
  }
  func.func @transform_3(%arg0: i32, %arg1: i32) -> (i32, i32) {
    %c0_i32 = arith.constant 0 : i32
    %c0_i32_0 = arith.constant 0 : i32
    %c0_i32_1 = arith.constant 0 : i32
    return %c0_i32, %c0_i32_0 : i32, i32
  }
  func.func @transform_4(%arg0: i32, %arg1: i32) -> (i32, i32) {
    %c0_i32 = arith.constant 0 : i32
    %c0_i32_0 = arith.constant 0 : i32
    %c0_i32_1 = arith.constant 0 : i32
    return %c0_i32, %c0_i32_0 : i32, i32
  }
  func.func @transform_5(%arg0: i32, %arg1: i32) -> (i32, i32) {
    %c0_i32 = arith.constant 0 : i32
    %c0_i32_0 = arith.constant 0 : i32
    %c0_i32_1 = arith.constant 0 : i32
    return %c0_i32, %c0_i32_0 : i32, i32
  }
  func.func @transform_6(%arg0: i32, %arg1: i32) -> (i32, i32) {
    %c0_i32 = arith.constant 0 : i32
    %c0_i32_0 = arith.constant 0 : i32
    %c0_i32_1 = arith.constant 0 : i32
    return %c0_i32, %c0_i32_0 : i32, i32
  }
  func.func @transform_7(%arg0: i32, %arg1: i32) -> (i32, i32) {
    %c0_i32 = arith.constant 0 : i32
    %c0_i32_0 = arith.constant 0 : i32
    %c0_i32_1 = arith.constant 0 : i32
    return %c0_i32, %c0_i32_0 : i32, i32
  }
  func.func @transform_8(%arg0: i32, %arg1: i32) -> (i32, i32) {
    %c0_i32 = arith.constant 0 : i32
    %c0_i32_0 = arith.constant 0 : i32
    %c0_i32_1 = arith.constant 0 : i32
    return %c0_i32, %c0_i32_0 : i32, i32
  }
  func.func @transform_9(%arg0: i32, %arg1: i32) -> (i32, i32) {
    %c0_i32 = arith.constant 0 : i32
    %c0_i32_0 = arith.constant 0 : i32
    %c0_i32_1 = arith.constant 0 : i32
    return %c0_i32, %c0_i32_0 : i32, i32
  }
  func.func @transform_10(%arg0: i32, %arg1: i32) -> (i32, i32) {
    %c0_i32 = arith.constant 0 : i32
    %c0_i32_0 = arith.constant 0 : i32
    %c0_i32_1 = arith.constant 0 : i32
    return %c0_i32, %c0_i32_0 : i32, i32
  }
  func.func @transform_11(%arg0: i32, %arg1: i32) -> (i32, i32) {
    %c0_i32 = arith.constant 0 : i32
    %c0_i32_0 = arith.constant 0 : i32
    %c0_i32_1 = arith.constant 0 : i32
    return %c0_i32, %c0_i32_0 : i32, i32
  }
  func.func @transform_12(%arg0: i32, %arg1: i32) -> (i32, i32, i32) {
    %c0_i32 = arith.constant 0 : i32
    %c0_i32_0 = arith.constant 0 : i32
    return %arg1, %arg0, %c0_i32 : i32, i32, i32
  }
}

</mosaic_0001>

<llo_original>
// kernel: factored_lstm_forward.1
$region0: #{factored_lstm_forward.1}
  #allocation0 [shape = 'u32[]', space=smem, size = 0x4, offset = 0x4, fixed_abs, tag = 'smem constant byte address 0x4 - core index']
  #allocation1 [shape = 'u32[144,128]{1,0:T(1,128)}', space=vmem, size = 0x12000, scoped, tag = 'internal scratch']
  #allocation2 [shape = 'f32[2,32]{1,0:T(2,128)}', space=vmem, size = 0x400, scoped, tag = 'scratch operand']
  #allocation3 [shape = 'f32[2,32]{1,0:T(2,128)}', space=vmem, size = 0x400, scoped, tag = 'scratch operand']
  %s0 = inlined_call_operand.vmem [shape: f32[8,2,32], index: 0, kind: input, shape index: {}]
  %s1 = inlined_call_operand.vmem [shape: f32[2,32], index: 1, kind: input, shape index: {}]
  %s2 = inlined_call_operand.vmem [shape: f32[2,32], index: 2, kind: input, shape index: {}]
  %s3 = inlined_call_operand.vmem [shape: f32[32,128], index: 3, kind: input, shape index: {}]
  %s4 = inlined_call_operand.vmem [shape: f32[1,128], index: 4, kind: input, shape index: {}]
  %s5 = inlined_call_operand.vmem [shape: f32[128,128], index: 5, kind: input, shape index: {}]
  %s6 = inlined_call_operand.vmem [shape: f32[1,128], index: 6, kind: input, shape index: {}]
  %s7 = inlined_call_operand.vmem [shape: f32[128,128], index: 7, kind: input, shape index: {}]
  %s8 = inlined_call_operand.vmem [shape: f32[32,128], index: 8, kind: input, shape index: {}]
  %s9 = inlined_call_operand.vmem [shape: f32[1,128], index: 9, kind: input, shape index: {}]
  %s10 = inlined_call_operand.vmem [shape: f32[32,128], index: 10, kind: input, shape index: {}]
  %s11 = inlined_call_operand.vmem [shape: f32[1,128], index: 11, kind: input, shape index: {}]
  %s12 = inlined_call_operand.vmem [shape: f32[8,2,128], index: 12, kind: output, shape index: {}]
  %s13 = sld [smem:[#allocation0]]
  $region85: #{factored_lstm_forward.1} parent=0
    _
  %s15 = ssub.s32 1, %s13
  %s16 = scalar_select 0, %s15, %s13
  loop: start=0, step=1, limit=10
  $region2: #{factored_lstm_forward.1} parent=0 // loop_pre_header
    _
  $region3: #{factored_lstm_forward.1} parent=0 // loop_header
    %s18 = sphi 0, %s22
    %p19 = scmp.ge.s32.totalorder %s18, 10
    %s25 = sphi 0, %s37
    %s26 = sphi 0, %s33
    %s27 = sphi 0, %s25
    %s28 = sphi 0, %s26
    %s29 = sphi 0, %s27
    %s30 = sphi 0, %s28
    %s42 = sphi 0, %s44
    %s45 = sphi 0, %s42
    %s46 = sphi 0, %s45
    %s62 = sphi 0, %s46
    %s68 = sphi 0, %s70
    %s71 = sphi 0, %s68
    %s72 = sphi 0, %s71
    %s88 = sphi 0, %s72
    %s94 = sphi 0, %s96
    %s97 = sphi 0, %s94
    %s98 = sphi 0, %s97
    %s114 = sphi 0, %s98
    %s118 = sphi 0, %s118
    %s120 = sphi 0, %s118
    %s121 = sphi 0, %s120
    %s135 = sphi 0, %s121
    %s139 = sphi 0, %s139
    %s141 = sphi 0, %s139
    %s142 = sphi 0, %s141
    %s156 = sphi 0, %s142
    %s160 = sphi 0, %s160
    %s162 = sphi 0, %s160
    %s163 = sphi 0, %s162
    %s177 = sphi 0, %s163
    %s181 = sphi 0, %s181
    %s183 = sphi 0, %s181
    %s184 = sphi 0, %s183
    %s198 = sphi 0, %s184
    %s202 = sphi 0, %s202
    %s204 = sphi 0, %s202
    %s205 = sphi 0, %s204
    %s219 = sphi 0, %s205
    %s223 = sphi 0, %s223
    %s225 = sphi 0, %s223
    %s226 = sphi 0, %s225
    %s240 = sphi 0, %s226
    %s244 = sphi 0, %s244
    %s246 = sphi 0, %s244
    %s247 = sphi 0, %s246
    %s261 = sphi 0, %s247
    %s265 = sphi 0, %s265
    %s267 = sphi 0, %s265
    %s268 = sphi 0, %s267
    %s282 = sphi 0, %s268
    %s286 = sphi 0, %s286
    %s288 = sphi 0, %s286
    %s289 = sphi 0, %s288
    %s303 = sphi 0, %s289
    %s311 = sphi 0, %s313
    %s314 = sphi 0, %s311
    %s315 = sphi 0, %s314
    %s331 = sphi 0, %s315
  $region4: #{factored_lstm_forward.1} parent=0 // loop_header_branch
    %21 = sbr.rel (%p19) target = $region8
  $region5: #{factored_lstm_forward.1} parent=0 // loop_body
    %s23 = ssub.s32 %s18, 1
    %s24 = ssub.s32 %s18, 2
    %s31 = sadd.s32 1, %s26
    %p32 = scmp.ge.s32.totalorder %s31, 8
    %s33 = scalar_select %p32, 0, %s31
    %s34 = sadd.s32 1, %s25
    %s35 = scalar_select %p32, %s34, %s25
    %p36 = scmp.ge.s32.totalorder %s35, 1
    %s37 = scalar_select %p36, 0, %s35
    %s38 = ssub.s32 %s26, %s33
    %s39 = ssub.s32 %s25, %s37
    %s40 = sor.u32 %s38, %s39
    %p41 = scmp.eq.s32.totalorder %s40, 0
    %s43 = sadd.s32 %s42, 1
    %s44 = scalar_select %p41, %s42, %s43
    %p47 = pneg %p41
    %p48 = scmp.eq.s32.totalorder %s18, 7
    %p49 = por %p47, %p48
    %p50 = scmp.ne.s32.totalorder %s42, %s45
    %p51 = scmp.eq.s32.totalorder %s18, 0
    %p52 = por %p50, %p51
    %p53 = scmp.ne.s32.totalorder %s42, %s45
    %p54 = scmp.eq.s32.totalorder %s23, 7
    %p55 = por %p53, %p54
    %p56 = scmp.ne.s32.totalorder %s45, %s46
    %p57 = scmp.eq.s32.totalorder %s23, 0
    %p58 = por %p56, %p57
    %p59 = scmp.ne.s32.totalorder %s45, %s46
    %p60 = scmp.eq.s32.totalorder %s24, 7
    %p61 = por %p59, %p60
    %p63 = scmp.ne.s32.totalorder %s46, %s62
    %p64 = scmp.eq.s32.totalorder %s24, 0
    %p65 = por %p63, %p64
    %s66 = ssub.s32 %s25, %s37
    %p67 = scmp.eq.s32.totalorder %s66, 0
    %s69 = sadd.s32 %s68, 1
    %s70 = scalar_select %p67, %s68, %s69
    %p73 = pneg %p67
    %p74 = scmp.eq.s32.totalorder %s18, 7
    %p75 = por %p73, %p74
    %p76 = scmp.ne.s32.totalorder %s68, %s71
    %p77 = scmp.eq.s32.totalorder %s18, 0
    %p78 = por %p76, %p77
    %p79 = scmp.ne.s32.totalorder %s68, %s71
    %p80 = scmp.eq.s32.totalorder %s23, 7
    %p81 = por %p79, %p80
    %p82 = scmp.ne.s32.totalorder %s71, %s72
    %p83 = scmp.eq.s32.totalorder %s23, 0
    %p84 = por %p82, %p83
    %p85 = scmp.ne.s32.totalorder %s71, %s72
    %p86 = scmp.eq.s32.totalorder %s24, 7
    %p87 = por %p85, %p86
    %p89 = scmp.ne.s32.totalorder %s72, %s88
    %p90 = scmp.eq.s32.totalorder %s24, 0
    %p91 = por %p89, %p90
    %s92 = ssub.s32 %s25, %s37
    %p93 = scmp.eq.s32.totalorder %s92, 0
    %s95 = sadd.s32 %s94, 1
    %s96 = scalar_select %p93, %s94, %s95
    %p99 = pneg %p93
    %p100 = scmp.eq.s32.totalorder %s18, 7
    %p101 = por %p99, %p100
    %p102 = scmp.ne.s32.totalorder %s94, %s97
    %p103 = scmp.eq.s32.totalorder %s18, 0
    %p104 = por %p102, %p103
    %p105 = scmp.ne.s32.totalorder %s94, %s97
    %p106 = scmp.eq.s32.totalorder %s23, 7
    %p107 = por %p105, %p106
    %p108 = scmp.ne.s32.totalorder %s97, %s98
    %p109 = scmp.eq.s32.totalorder %s23, 0
    %p110 = por %p108, %p109
    %p111 = scmp.ne.s32.totalorder %s97, %s98
    %p112 = scmp.eq.s32.totalorder %s24, 7
    %p113 = por %p111, %p112
    %p115 = scmp.ne.s32.totalorder %s98, %s114
    %p116 = scmp.eq.s32.totalorder %s24, 0
    %p117 = por %p115, %p116
    %s119 = sadd.s32 %s118, 1
    %p122 = scmp.eq.s32.totalorder %s18, 7
    %p123 = scmp.ne.s32.totalorder %s118, %s120
    %p124 = scmp.eq.s32.totalorder %s18, 0
    %p125 = por %p123, %p124
    %p126 = scmp.ne.s32.totalorder %s118, %s120
    %p127 = scmp.eq.s32.totalorder %s23, 7
    %p128 = por %p126, %p127
    %p129 = scmp.ne.s32.totalorder %s120, %s121
    %p130 = scmp.eq.s32.totalorder %s23, 0
    %p131 = por %p129, %p130
    %p132 = scmp.ne.s32.totalorder %s120, %s121
    %p133 = scmp.eq.s32.totalorder %s24, 7
    %p134 = por %p132, %p133
    %p136 = scmp.ne.s32.totalorder %s121, %s135
    %p137 = scmp.eq.s32.totalorder %s24, 0
    %p138 = por %p136, %p137
    %s140 = sadd.s32 %s139, 1
    %p143 = scmp.eq.s32.totalorder %s18, 7
    %p144 = scmp.ne.s32.totalorder %s139, %s141
    %p145 = scmp.eq.s32.totalorder %s18, 0
    %p146 = por %p144, %p145
    %p147 = scmp.ne.s32.totalorder %s139, %s141
    %p148 = scmp.eq.s32.totalorder %s23, 7
    %p149 = por %p147, %p148
    %p150 = scmp.ne.s32.totalorder %s141, %s142
    %p151 = scmp.eq.s32.totalorder %s23, 0
    %p152 = por %p150, %p151
    %p153 = scmp.ne.s32.totalorder %s141, %s142
    %p154 = scmp.eq.s32.totalorder %s24, 7
    %p155 = por %p153, %p154
    %p157 = scmp.ne.s32.totalorder %s142, %s156
    %p158 = scmp.eq.s32.totalorder %s24, 0
    %p159 = por %p157, %p158
    %s161 = sadd.s32 %s160, 1
    %p164 = scmp.eq.s32.totalorder %s18, 7
    %p165 = scmp.ne.s32.totalorder %s160, %s162
    %p166 = scmp.eq.s32.totalorder %s18, 0
    %p167 = por %p165, %p166
    %p168 = scmp.ne.s32.totalorder %s160, %s162
    %p169 = scmp.eq.s32.totalorder %s23, 7
    %p170 = por %p168, %p169
    %p171 = scmp.ne.s32.totalorder %s162, %s163
    %p172 = scmp.eq.s32.totalorder %s23, 0
    %p173 = por %p171, %p172
    %p174 = scmp.ne.s32.totalorder %s162, %s163
    %p175 = scmp.eq.s32.totalorder %s24, 7
    %p176 = por %p174, %p175
    %p178 = scmp.ne.s32.totalorder %s163, %s177
    %p179 = scmp.eq.s32.totalorder %s24, 0
    %p180 = por %p178, %p179
    %s182 = sadd.s32 %s181, 1
    %p185 = scmp.eq.s32.totalorder %s18, 7
    %p186 = scmp.ne.s32.totalorder %s181, %s183
    %p187 = scmp.eq.s32.totalorder %s18, 0
    %p188 = por %p186, %p187
    %p189 = scmp.ne.s32.totalorder %s181, %s183
    %p190 = scmp.eq.s32.totalorder %s23, 7
    %p191 = por %p189, %p190
    %p192 = scmp.ne.s32.totalorder %s183, %s184
    %p193 = scmp.eq.s32.totalorder %s23, 0
    %p194 = por %p192, %p193
    %p195 = scmp.ne.s32.totalorder %s183, %s184
    %p196 = scmp.eq.s32.totalorder %s24, 7
    %p197 = por %p195, %p196
    %p199 = scmp.ne.s32.totalorder %s184, %s198
    %p200 = scmp.eq.s32.totalorder %s24, 0
    %p201 = por %p199, %p200
    %s203 = sadd.s32 %s202, 1
    %p206 = scmp.eq.s32.totalorder %s18, 7
    %p207 = scmp.ne.s32.totalorder %s202, %s204
    %p208 = scmp.eq.s32.totalorder %s18, 0
    %p209 = por %p207, %p208
    %p210 = scmp.ne.s32.totalorder %s202, %s204
    %p211 = scmp.eq.s32.totalorder %s23, 7
    %p212 = por %p210, %p211
    %p213 = scmp.ne.s32.totalorder %s204, %s205
    %p214 = scmp.eq.s32.totalorder %s23, 0
    %p215 = por %p213, %p214
    %p216 = scmp.ne.s32.totalorder %s204, %s205
    %p217 = scmp.eq.s32.totalorder %s24, 7
    %p218 = por %p216, %p217
    %p220 = scmp.ne.s32.totalorder %s205, %s219
    %p221 = scmp.eq.s32.totalorder %s24, 0
    %p222 = por %p220, %p221
    %s224 = sadd.s32 %s223, 1
    %p227 = scmp.eq.s32.totalorder %s18, 7
    %p228 = scmp.ne.s32.totalorder %s223, %s225
    %p229 = scmp.eq.s32.totalorder %s18, 0
    %p230 = por %p228, %p229
    %p231 = scmp.ne.s32.totalorder %s223, %s225
    %p232 = scmp.eq.s32.totalorder %s23, 7
    %p233 = por %p231, %p232
    %p234 = scmp.ne.s32.totalorder %s225, %s226
    %p235 = scmp.eq.s32.totalorder %s23, 0
    %p236 = por %p234, %p235
    %p237 = scmp.ne.s32.totalorder %s225, %s226
    %p238 = scmp.eq.s32.totalorder %s24, 7
    %p239 = por %p237, %p238
    %p241 = scmp.ne.s32.totalorder %s226, %s240
    %p242 = scmp.eq.s32.totalorder %s24, 0
    %p243 = por %p241, %p242
    %s245 = sadd.s32 %s244, 1
    %p248 = scmp.eq.s32.totalorder %s18, 7
    %p249 = scmp.ne.s32.totalorder %s244, %s246
    %p250 = scmp.eq.s32.totalorder %s18, 0
    %p251 = por %p249, %p250
    %p252 = scmp.ne.s32.totalorder %s244, %s246
    %p253 = scmp.eq.s32.totalorder %s23, 7
    %p254 = por %p252, %p253
    %p255 = scmp.ne.s32.totalorder %s246, %s247
    %p256 = scmp.eq.s32.totalorder %s23, 0
    %p257 = por %p255, %p256
    %p258 = scmp.ne.s32.totalorder %s246, %s247
    %p259 = scmp.eq.s32.totalorder %s24, 7
    %p260 = por %p258, %p259
    %p262 = scmp.ne.s32.totalorder %s247, %s261
    %p263 = scmp.eq.s32.totalorder %s24, 0
    %p264 = por %p262, %p263
    %s266 = sadd.s32 %s265, 1
    %p269 = scmp.eq.s32.totalorder %s18, 7
    %p270 = scmp.ne.s32.totalorder %s265, %s267
    %p271 = scmp.eq.s32.totalorder %s18, 0
    %p272 = por %p270, %p271
    %p273 = scmp.ne.s32.totalorder %s265, %s267
    %p274 = scmp.eq.s32.totalorder %s23, 7
    %p275 = por %p273, %p274
    %p276 = scmp.ne.s32.totalorder %s267, %s268
    %p277 = scmp.eq.s32.totalorder %s23, 0
    %p278 = por %p276, %p277
    %p279 = scmp.ne.s32.totalorder %s267, %s268
    %p280 = scmp.eq.s32.totalorder %s24, 7
    %p281 = por %p279, %p280
    %p283 = scmp.ne.s32.totalorder %s268, %s282
    %p284 = scmp.eq.s32.totalorder %s24, 0
    %p285 = por %p283, %p284
    %s287 = sadd.s32 %s286, 1
    %p290 = scmp.eq.s32.totalorder %s18, 7
    %p291 = scmp.ne.s32.totalorder %s286, %s288
    %p292 = scmp.eq.s32.totalorder %s18, 0
    %p293 = por %p291, %p292
    %p294 = scmp.ne.s32.totalorder %s286, %s288
    %p295 = scmp.eq.s32.totalorder %s23, 7
    %p296 = por %p294, %p295
    %p297 = scmp.ne.s32.totalorder %s288, %s289
    %p298 = scmp.eq.s32.totalorder %s23, 0
    %p299 = por %p297, %p298
    %p300 = scmp.ne.s32.totalorder %s288, %s289
    %p301 = scmp.eq.s32.totalorder %s24, 7
    %p302 = por %p300, %p301
    %p304 = scmp.ne.s32.totalorder %s289, %s303
    %p305 = scmp.eq.s32.totalorder %s24, 0
    %p306 = por %p304, %p305
    %s307 = ssub.s32 %s26, %s33
    %s308 = ssub.s32 %s25, %s37
    %s309 = sor.u32 %s307, %s308
    %p310 = scmp.eq.s32.totalorder %s309, 0
    %s312 = sadd.s32 %s311, 1
    %s313 = scalar_select %p310, %s311, %s312
    %p316 = pneg %p310
    %p317 = scmp.eq.s32.totalorder %s18, 7
    %p318 = por %p316, %p317
    %p319 = scmp.ne.s32.totalorder %s311, %s314
    %p320 = scmp.eq.s32.totalorder %s18, 0
    %p321 = por %p319, %p320
    %p322 = scmp.ne.s32.totalorder %s311, %s314
    %p323 = scmp.eq.s32.totalorder %s23, 7
    %p324 = por %p322, %p323
    %p325 = scmp.ne.s32.totalorder %s314, %s315
    %p326 = scmp.eq.s32.totalorder %s23, 0
    %p327 = por %p325, %p326
    %p328 = scmp.ne.s32.totalorder %s314, %s315
    %p329 = scmp.eq.s32.totalorder %s24, 7
    %p330 = por %p328, %p329
    %p332 = scmp.ne.s32.totalorder %s315, %s331
    %p333 = scmp.eq.s32.totalorder %s24, 0
    %p334 = por %p332, %p333
    %p335 = scmp.le.s32.totalorder 1, %s18
    %p336 = scmp.lt.s32.totalorder %s18, 9
    %p337 = pnand %p335, %p336
    %p338 = pneg %p337
    // Predicated region
    $region9: #{factored_lstm_forward.1} parent=5 // pred_check
      _
    $region10: #{factored_lstm_forward.1} parent=5 // pred_check_branch
      %340 = sbr.rel (%p337) target = $region12
    $region11: #{factored_lstm_forward.1} parent=5 // pred_region
      %s341 = ssub.s32 %s18, 1
      // Predicated region
      $region13: #{factored_lstm_forward.1} parent=11 // pred_check
        %p342 = pneg %p84
      $region14: #{factored_lstm_forward.1} parent=11 // pred_check_branch
        %344 = sbr.rel (%p342) target = $region16
      $region15: #{factored_lstm_forward.1} parent=11 // pred_region
        %p345 = scmp.lt.s32.totalorder %s27, 0
        %s346 = scalar_select %p345, %s27, 0
        %s347 = smul.addr %s346, 2
        %s348 = scalar_lea.vmem %s1, %s347
      $region16: #{factored_lstm_forward.1} parent=11 // pred_fallthru
        _
      // Predicated region
      $region17: #{factored_lstm_forward.1} parent=11 // pred_check
        %p349 = pneg %p110
      $region18: #{factored_lstm_forward.1} parent=11 // pred_check_branch
        %351 = sbr.rel (%p349) target = $region20
      $region19: #{factored_lstm_forward.1} parent=11 // pred_region
        %p352 = scmp.lt.s32.totalorder %s27, 0
        %s353 = scalar_select %p352, %s27, 0
        %s354 = smul.addr %s353, 2
        %s355 = scalar_lea.vmem %s2, %s354
      $region20: #{factored_lstm_forward.1} parent=11 // pred_fallthru
        _
      // Predicated region
      $region21: #{factored_lstm_forward.1} parent=11 // pred_check
        %p356 = pneg %p131
      $region22: #{factored_lstm_forward.1} parent=11 // pred_check_branch
        %358 = sbr.rel (%p356) target = $region24
      $region23: #{factored_lstm_forward.1} parent=11 // pred_region
        _
      $region24: #{factored_lstm_forward.1} parent=11 // pred_fallthru
        _
      // Predicated region
      $region25: #{factored_lstm_forward.1} parent=11 // pred_check
        %p359 = pneg %p152
      $region26: #{factored_lstm_forward.1} parent=11 // pred_check_branch
        %361 = sbr.rel (%p359) target = $region28
      $region27: #{factored_lstm_forward.1} parent=11 // pred_region
        _
      $region28: #{factored_lstm_forward.1} parent=11 // pred_fallthru
        _
      // Predicated region
      $region29: #{factored_lstm_forward.1} parent=11 // pred_check
        %p362 = pneg %p173
      $region30: #{factored_lstm_forward.1} parent=11 // pred_check_branch
        %364 = sbr.rel (%p362) target = $region32
      $region31: #{factored_lstm_forward.1} parent=11 // pred_region
        _
      $region32: #{factored_lstm_forward.1} parent=11 // pred_fallthru
        _
      // Predicated region
      $region33: #{factored_lstm_forward.1} parent=11 // pred_check
        %p365 = pneg %p194
      $region34: #{factored_lstm_forward.1} parent=11 // pred_check_branch
        %367 = sbr.rel (%p365) target = $region36
      $region35: #{factored_lstm_forward.1} parent=11 // pred_region
        _
      $region36: #{factored_lstm_forward.1} parent=11 // pred_fallthru
        _
      // Predicated region
      $region37: #{factored_lstm_forward.1} parent=11 // pred_check
        %p368 = pneg %p215
      $region38: #{factored_lstm_forward.1} parent=11 // pred_check_branch
        %370 = sbr.rel (%p368) target = $region40
      $region39: #{factored_lstm_forward.1} parent=11 // pred_region
        _
      $region40: #{factored_lstm_forward.1} parent=11 // pred_fallthru
        _
      // Predicated region
      $region41: #{factored_lstm_forward.1} parent=11 // pred_check
        %p371 = pneg %p236
      $region42: #{factored_lstm_forward.1} parent=11 // pred_check_branch
        %373 = sbr.rel (%p371) target = $region44
      $region43: #{factored_lstm_forward.1} parent=11 // pred_region
        _
      $region44: #{factored_lstm_forward.1} parent=11 // pred_fallthru
        _
      // Predicated region
      $region45: #{factored_lstm_forward.1} parent=11 // pred_check
        %p374 = pneg %p257
      $region46: #{factored_lstm_forward.1} parent=11 // pred_check_branch
        %376 = sbr.rel (%p374) target = $region48
      $region47: #{factored_lstm_forward.1} parent=11 // pred_region
        _
      $region48: #{factored_lstm_forward.1} parent=11 // pred_fallthru
        _
      // Predicated region
      $region49: #{factored_lstm_forward.1} parent=11 // pred_check
        %p377 = pneg %p278
      $region50: #{factored_lstm_forward.1} parent=11 // pred_check_branch
        %379 = sbr.rel (%p377) target = $region52
      $region51: #{factored_lstm_forward.1} parent=11 // pred_region
        _
      $region52: #{factored_lstm_forward.1} parent=11 // pred_fallthru
        _
      // Predicated region
      $region53: #{factored_lstm_forward.1} parent=11 // pred_check
        %p380 = pneg %p299
      $region54: #{factored_lstm_forward.1} parent=11 // pred_check_branch
        %382 = sbr.rel (%p380) target = $region56
      $region55: #{factored_lstm_forward.1} parent=11 // pred_region
        _
      $region56: #{factored_lstm_forward.1} parent=11 // pred_fallthru
        _
    $region12: #{factored_lstm_forward.1} parent=5 // pred_fallthru
      _
    %p383 = scmp.lt.s32.totalorder %s18, 8
    // Predicated region
    $region57: #{factored_lstm_forward.1} parent=5 // pred_check
      %p384 = pneg %p383
    $region58: #{factored_lstm_forward.1} parent=5 // pred_check_branch
      %386 = sbr.rel (%p384) target = $region60
    $region59: #{factored_lstm_forward.1} parent=5 // pred_region
      // Predicated region
      $region61: #{factored_lstm_forward.1} parent=59 // pred_check
        %p387 = pneg %p52
      $region62: #{factored_lstm_forward.1} parent=59 // pred_check_branch
        %389 = sbr.rel (%p387) target = $region64
      $region63: #{factored_lstm_forward.1} parent=59 // pred_region
        %p390 = scmp.lt.s32.totalorder %s26, 7
        %s391 = scalar_select %p390, %s26, 7
        %p392 = scmp.lt.s32.totalorder %s25, 0
        %s393 = scalar_select %p392, %s25, 0
        %s394 = sadd.s32 %s393, %s391
        %s395 = smul.addr %s394, 2
        %s396 = scalar_lea.vmem %s0, %s395
      $region64: #{factored_lstm_forward.1} parent=59 // pred_fallthru
        _
    $region60: #{factored_lstm_forward.1} parent=5 // pred_fallthru
      _
    %p397 = scmp.le.s32.totalorder 1, %s18
    %p398 = scmp.lt.s32.totalorder %s18, 9
    %p399 = pnand %p397, %p398
    %p400 = pneg %p399
    // Predicated region
    $region65: #{factored_lstm_forward.1} parent=5 // pred_check
      _
    $region66: #{factored_lstm_forward.1} parent=5 // pred_check_branch
      %402 = sbr.rel (%p399) target = $region68
    $region67: #{factored_lstm_forward.1} parent=5 // pred_region
      %s403 = ssub.s32 %s18, 1
      %p404 = scmp.lt.s32.totalorder %s28, 7
      %s405 = scalar_select %p404, %s28, 7
      %p406 = scmp.lt.s32.totalorder %s27, 0
      %s407 = scalar_select %p406, %s27, 0
      %s408 = sadd.s32 %s407, %s405
      %s409 = smul.addr %s408, 2
      %s410 = scalar_lea.vmem %s0, %s409
      %p411 = pneg %p58
      %p412 = pneg %p55
      %p413 = scmp.lt.s32.totalorder %s27, 0
      %s414 = scalar_select %p413, %s27, 0
      %s415 = smul.addr %s414, 2
      %s416 = scalar_lea.vmem %s1, %s415
      %p417 = pneg %p84
      %p418 = pneg %p81
      %p419 = scmp.lt.s32.totalorder %s27, 0
      %s420 = scalar_select %p419, %s27, 0
      %s421 = smul.addr %s420, 2
      %s422 = scalar_lea.vmem %s2, %s421
      %p423 = pneg %p110
      %p424 = pneg %p107
      %p425 = pneg %p131
      %p426 = pneg %p128
      %p427 = pneg %p152
      %p428 = pneg %p149
      %p429 = pneg %p173
      %p430 = pneg %p170
      %p431 = pneg %p194
      %p432 = pneg %p191
      %p433 = pneg %p215
      %p434 = pneg %p212
      %p435 = pneg %p236
      %p436 = pneg %p233
      %p437 = pneg %p257
      %p438 = pneg %p254
      %p439 = pneg %p278
      %p440 = pneg %p275
      %p441 = pneg %p299
      %p442 = pneg %p296
      %p443 = pneg %p327
      %p444 = pneg %p324
      %p445 = scmp.lt.s32.totalorder %s28, 7
      %s446 = scalar_select %p445, %s28, 7
      %p447 = scmp.lt.s32.totalorder %s27, 0
      %s448 = scalar_select %p447, %s27, 0
      %s449 = sadd.s32 %s448, %s446
      %s450 = smul.addr %s449, 2
      %s451 = scalar_lea.vmem %s12, %s450
      %p452 = scmp.lt.s32.totalorder %s28, 7
      %s453 = scalar_select %p452, %s28, 7
      %p454 = scmp.lt.s32.totalorder %s27, 0
      %s455 = scalar_select %p454, %s27, 0
      %s456 = sadd.s32 %s455, %s453
      %s457 = smul.addr %s456, 2
      %s458 = scalar_lea.vmem %s0, %s457
      %p459 = scmp.lt.s32.totalorder %s27, 0
      %s460 = scalar_select %p459, %s27, 0
      %s461 = smul.addr %s460, 2
      %s462 = scalar_lea.vmem %s1, %s461
      %p463 = scmp.lt.s32.totalorder %s27, 0
      %s464 = scalar_select %p463, %s27, 0
      %s465 = smul.addr %s464, 2
      %s466 = scalar_lea.vmem %s2, %s465
      %p467 = scmp.lt.s32.totalorder %s28, 7
      %s468 = scalar_select %p467, %s28, 7
      %p469 = scmp.lt.s32.totalorder %s27, 0
      %s470 = scalar_select %p469, %s27, 0
      %s471 = sadd.s32 %s470, %s468
      %s472 = smul.addr %s471, 2
      %s473 = scalar_lea.vmem %s12, %s472
      %p474 = scmp.eq.s32.totalorder %s28, 0
      // Predicated region
      $region69: #{factored_lstm_forward.1} parent=67 // pred_check
        %p475 = pneg %p474
      $region70: #{factored_lstm_forward.1} parent=67 // pred_check_branch
        %477 = sbr.rel (%p475) target = $region72
      $region71: #{factored_lstm_forward.1} parent=67 // pred_region
        %v478 = vld [vmem:[%s462] sm:$0x3]
        %vm479 = vcmask 254976
        %480 = vst.msk [vmem:[#allocation2] sm:$0x3] %vm479, %v478
        %v481 = vld [vmem:[%s466] sm:$0x3]
        %482 = vst.msk [vmem:[#allocation3] sm:$0x3] %vm479, %v481
      $region72: #{factored_lstm_forward.1} parent=67 // pred_fallthru
        _
      %v483 = vld [vmem:[%s458] sm:$0x3]
      %v484 = vld [vmem:[#allocation2] sm:$0x3]
      %v485 = vld [vmem:[#allocation3] sm:$0x3]
      %v486 = vld [vmem:[%s3] sm:$0xff]
      %v487 = vld [vmem:[%s3 + $0x8] sm:$0xff]
      %v488 = vld [vmem:[%s3 + $0x10] sm:$0xff]
      %v489 = vld [vmem:[%s3 + $0x18] sm:$0xff]
      %v490 = vld [vmem:[%s4] sm:$0x1]
      %v492 = vlaneseq
      %v493 = vshrl.u32 %v492, 7
      %v494 = vsub.s32 0, %v493
      %v495 = vrot.slane %v490, %v494
      %vm497 = vcmask 261120
      %v499 = vsel %vm497, %v483, 0
      %501 = vmatprep.subr.mxu0 0.0
      %502 = vmatpush1.msra.mxu0 0.0
      %503 = vmatprep.subr.mxu0 0.0
      %504 = vmatpush1.msra.mxu0 0.0
      %505 = vmatprep.subr.mxu0 0.0
      %506 = vmatpush1.msra.mxu0 0.0
      %507 = vmatprep.subr.mxu0 0.0
      %508 = vmatpush1.msra.mxu0 0.0
      %509 = vmatprep.subr.mxu0 0.0
      %510 = vmatpush1.msra.mxu0 0.0
      %511 = vmatprep.subr.mxu0 0.0
      %512 = vmatpush1.msra.mxu0 0.0
      %513 = vmatprep.subr.mxu0 0.0
      %514 = vmatpush1.msra.mxu0 0.0
      %515 = vmatprep.subr.mxu0 0.0
      %516 = vmatpush1.msra.mxu0 0.0
      %517 = vmatprep.subr.mxu0 0.0
      %518 = vmatpush1.msra.mxu0 0.0
      %519 = vmatprep.subr.mxu0 0.0
      %520 = vmatpush1.msra.mxu0 0.0
      %521 = vmatprep.subr.mxu0 0.0
      %522 = vmatpush1.msra.mxu0 0.0
      %523 = vmatprep.subr.mxu0 0.0
      %524 = vmatpush1.msra.mxu0 0.0
      %525 = vmatprep.subr.mxu0 0.0
      %526 = vmatpush1.msra.mxu0 %v489
      %527 = vmatprep.subr.mxu0 0.0
      %528 = vmatpush1.msra.mxu0 %v488
      %529 = vmatprep.subr.mxu0 0.0
      %530 = vmatpush1.msra.mxu0 %v487
      %531 = vmatprep.subr.mxu0 0.0
      %532 = vmatpush1.msra.mxu0 %v486
      %533 = vmatprep.subr.mxu0 0.0
      %534 = vmatpush2.msra.mxu0 0.0
      %535 = vmatprep.subr.mxu0 0.0
      %536 = vmatpush2.msra.mxu0 0.0
      %537 = vmatprep.subr.mxu0 0.0
      %538 = vmatpush2.msra.mxu0 0.0
      %539 = vmatprep.subr.mxu0 0.0
      %540 = vmatpush2.msra.mxu0 0.0
      %541 = vmatprep.subr.mxu0 0.0
      %542 = vmatpush2.msra.mxu0 0.0
      %543 = vmatprep.subr.mxu0 0.0
      %544 = vmatpush2.msra.mxu0 0.0
      %545 = vmatprep.subr.mxu0 0.0
      %546 = vmatpush2.msra.mxu0 0.0
      %547 = vmatprep.subr.mxu0 0.0
      %548 = vmatpush2.msra.mxu0 0.0
      %549 = vmatprep.subr.mxu0 0.0
      %550 = vmatpush2.msra.mxu0 0.0
      %551 = vmatprep.subr.mxu0 0.0
      %552 = vmatpush2.msra.mxu0 0.0
      %553 = vmatprep.subr.mxu0 0.0
      %554 = vmatpush2.msra.mxu0 0.0
      %555 = vmatprep.subr.mxu0 0.0
      %556 = vmatpush2.msra.mxu0 0.0
      %557 = vmatprep.subr.mxu0 0.0
      %558 = vmatpush2.msra.mxu0 0.0
      %559 = vmatprep.subr.mxu0 0.0
      %560 = vmatpush2.msra.mxu0 0.0
      %561 = vmatprep.subr.mxu0 0.0
      %562 = vmatpush2.msra.mxu0 0.0
      %563 = vmatprep.subr.mxu0 0.0
      %564 = vmatpush2.msra.mxu0 0.0
      %565 = vmatprep.mubr.f32.mxu0 0.0
      %566 = vmatmul.mubr.f32.gmra.mxu0 %v499
      %v567 = vpop.f32.mrf.mxu0
      %v568 = vadd.f32 %v495, %v567
      %v569 = vpop.f32.mrf.mxu0
      %570 = vdwg.mxu0
      %v571 = vld [vmem:[%s5] sm:$0xff]
      %v572 = vld [vmem:[%s5 + $0x8] sm:$0xff]
      %v573 = vld [vmem:[%s5 + $0x10] sm:$0xff]
      %v574 = vld [vmem:[%s5 + $0x18] sm:$0xff]
      %v575 = vld [vmem:[%s5 + $0x20] sm:$0xff]
      %v576 = vld [vmem:[%s5 + $0x28] sm:$0xff]
      %v577 = vld [vmem:[%s5 + $0x30] sm:$0xff]
      %v578 = vld [vmem:[%s5 + $0x38] sm:$0xff]
      %v579 = vld [vmem:[%s5 + $0x40] sm:$0xff]
      %v580 = vld [vmem:[%s5 + $0x48] sm:$0xff]
      %v581 = vld [vmem:[%s5 + $0x50] sm:$0xff]
      %v582 = vld [vmem:[%s5 + $0x58] sm:$0xff]
      %v583 = vld [vmem:[%s5 + $0x60] sm:$0xff]
      %v584 = vld [vmem:[%s5 + $0x68] sm:$0xff]
      %v585 = vld [vmem:[%s5 + $0x70] sm:$0xff]
      %v586 = vld [vmem:[%s5 + $0x78] sm:$0xff]
      %v587 = vld [vmem:[%s6] sm:$0x1]
      %v589 = vlaneseq
      %v590 = vshrl.u32 %v589, 7
      %v591 = vsub.s32 0, %v590
      %v592 = vrot.slane %v587, %v591
      %594 = vmatprep.subr.mxu0 0.0
      %595 = vmatpush1.msra.mxu0 %v586
      %596 = vmatprep.subr.mxu0 0.0
      %597 = vmatpush1.msra.mxu0 %v585
      %598 = vmatprep.subr.mxu0 0.0
      %599 = vmatpush1.msra.mxu0 %v584
      %600 = vmatprep.subr.mxu0 0.0
      %601 = vmatpush1.msra.mxu0 %v583
      %602 = vmatprep.subr.mxu0 0.0
      %603 = vmatpush1.msra.mxu0 %v582
      %604 = vmatprep.subr.mxu0 0.0
      %605 = vmatpush1.msra.mxu0 %v581
      %606 = vmatprep.subr.mxu0 0.0
      %607 = vmatpush1.msra.mxu0 %v580
      %608 = vmatprep.subr.mxu0 0.0
      %609 = vmatpush1.msra.mxu0 %v579
      %610 = vmatprep.subr.mxu0 0.0
      %611 = vmatpush1.msra.mxu0 %v578
      %612 = vmatprep.subr.mxu0 0.0
      %613 = vmatpush1.msra.mxu0 %v577
      %614 = vmatprep.subr.mxu0 0.0
      %615 = vmatpush1.msra.mxu0 %v576
      %616 = vmatprep.subr.mxu0 0.0
      %617 = vmatpush1.msra.mxu0 %v575
      %618 = vmatprep.subr.mxu0 0.0
      %619 = vmatpush1.msra.mxu0 %v574
      %620 = vmatprep.subr.mxu0 0.0
      %621 = vmatpush1.msra.mxu0 %v573
      %622 = vmatprep.subr.mxu0 0.0
      %623 = vmatpush1.msra.mxu0 %v572
      %624 = vmatprep.subr.mxu0 0.0
      %625 = vmatpush1.msra.mxu0 %v571
      %626 = vmatprep.subr.mxu0 0.0
      %627 = vmatpush2.msra.mxu0 0.0
      %628 = vmatprep.subr.mxu0 0.0
      %629 = vmatpush2.msra.mxu0 0.0
      %630 = vmatprep.subr.mxu0 0.0
      %631 = vmatpush2.msra.mxu0 0.0
      %632 = vmatprep.subr.mxu0 0.0
      %633 = vmatpush2.msra.mxu0 0.0
      %634 = vmatprep.subr.mxu0 0.0
      %635 = vmatpush2.msra.mxu0 0.0
      %636 = vmatprep.subr.mxu0 0.0
      %637 = vmatpush2.msra.mxu0 0.0
      %638 = vmatprep.subr.mxu0 0.0
      %639 = vmatpush2.msra.mxu0 0.0
      %640 = vmatprep.subr.mxu0 0.0
      %641 = vmatpush2.msra.mxu0 0.0
      %642 = vmatprep.subr.mxu0 0.0
      %643 = vmatpush2.msra.mxu0 0.0
      %644 = vmatprep.subr.mxu0 0.0
      %645 = vmatpush2.msra.mxu0 0.0
      %646 = vmatprep.subr.mxu0 0.0
      %647 = vmatpush2.msra.mxu0 0.0
      %648 = vmatprep.subr.mxu0 0.0
      %649 = vmatpush2.msra.mxu0 0.0
      %650 = vmatprep.subr.mxu0 0.0
      %651 = vmatpush2.msra.mxu0 0.0
      %652 = vmatprep.subr.mxu0 0.0
      %653 = vmatpush2.msra.mxu0 0.0
      %654 = vmatprep.subr.mxu0 0.0
      %655 = vmatpush2.msra.mxu0 0.0
      %656 = vmatprep.subr.mxu0 0.0
      %657 = vmatpush2.msra.mxu0 0.0
      %658 = vmatprep.mubr.f32.mxu0 0.0
      %659 = vmatmul.mubr.f32.gmra.mxu0 %v568
      %v660 = vpop.f32.mrf.mxu0
      %v661 = vadd.f32 %v592, %v660
      %v662 = vpop.f32.mrf.mxu0
      %663 = vdwg.mxu0
      %v664 = vld [vmem:[%s7] sm:$0xff]
      %v665 = vld [vmem:[%s7 + $0x8] sm:$0xff]
      %v666 = vld [vmem:[%s7 + $0x10] sm:$0xff]
      %v667 = vld [vmem:[%s7 + $0x18] sm:$0xff]
      %v668 = vld [vmem:[%s7 + $0x20] sm:$0xff]
      %v669 = vld [vmem:[%s7 + $0x28] sm:$0xff]
      %v670 = vld [vmem:[%s7 + $0x30] sm:$0xff]
      %v671 = vld [vmem:[%s7 + $0x38] sm:$0xff]
      %v672 = vld [vmem:[%s7 + $0x40] sm:$0xff]
      %v673 = vld [vmem:[%s7 + $0x48] sm:$0xff]
      %v674 = vld [vmem:[%s7 + $0x50] sm:$0xff]
      %v675 = vld [vmem:[%s7 + $0x58] sm:$0xff]
      %v676 = vld [vmem:[%s7 + $0x60] sm:$0xff]
      %v677 = vld [vmem:[%s7 + $0x68] sm:$0xff]
      %v678 = vld [vmem:[%s7 + $0x70] sm:$0xff]
      %v679 = vld [vmem:[%s7 + $0x78] sm:$0xff]
      %v680 = vld [vmem:[%s8] sm:$0xff]
      %v681 = vld [vmem:[%s8 + $0x8] sm:$0xff]
      %v682 = vld [vmem:[%s8 + $0x10] sm:$0xff]
      %v683 = vld [vmem:[%s8 + $0x18] sm:$0xff]
      %v685 = vsel %vm497, %v484, 0
      %687 = vmatprep.subr.mxu0 0.0
      %688 = vmatpush1.msra.mxu0 0.0
      %689 = vmatprep.subr.mxu0 0.0
      %690 = vmatpush1.msra.mxu0 0.0
      %691 = vmatprep.subr.mxu0 0.0
      %692 = vmatpush1.msra.mxu0 0.0
      %693 = vmatprep.subr.mxu0 0.0
      %694 = vmatpush1.msra.mxu0 0.0
      %695 = vmatprep.subr.mxu0 0.0
      %696 = vmatpush1.msra.mxu0 0.0
      %697 = vmatprep.subr.mxu0 0.0
      %698 = vmatpush1.msra.mxu0 0.0
      %699 = vmatprep.subr.mxu0 0.0
      %700 = vmatpush1.msra.mxu0 0.0
      %701 = vmatprep.subr.mxu0 0.0
      %702 = vmatpush1.msra.mxu0 0.0
      %703 = vmatprep.subr.mxu0 0.0
      %704 = vmatpush1.msra.mxu0 0.0
      %705 = vmatprep.subr.mxu0 0.0
      %706 = vmatpush1.msra.mxu0 0.0
      %707 = vmatprep.subr.mxu0 0.0
      %708 = vmatpush1.msra.mxu0 0.0
      %709 = vmatprep.subr.mxu0 0.0
      %710 = vmatpush1.msra.mxu0 0.0
      %711 = vmatprep.subr.mxu0 0.0
      %712 = vmatpush1.msra.mxu0 %v683
      %713 = vmatprep.subr.mxu0 0.0
      %714 = vmatpush1.msra.mxu0 %v682
      %715 = vmatprep.subr.mxu0 0.0
      %716 = vmatpush1.msra.mxu0 %v681
      %717 = vmatprep.subr.mxu0 0.0
      %718 = vmatpush1.msra.mxu0 %v680
      %719 = vmatprep.subr.mxu0 0.0
      %720 = vmatpush2.msra.mxu0 0.0
      %721 = vmatprep.subr.mxu0 0.0
      %722 = vmatpush2.msra.mxu0 0.0
      %723 = vmatprep.subr.mxu0 0.0
      %724 = vmatpush2.msra.mxu0 0.0
      %725 = vmatprep.subr.mxu0 0.0
      %726 = vmatpush2.msra.mxu0 0.0
      %727 = vmatprep.subr.mxu0 0.0
      %728 = vmatpush2.msra.mxu0 0.0
      %729 = vmatprep.subr.mxu0 0.0
      %730 = vmatpush2.msra.mxu0 0.0
      %731 = vmatprep.subr.mxu0 0.0
      %732 = vmatpush2.msra.mxu0 0.0
      %733 = vmatprep.subr.mxu0 0.0
      %734 = vmatpush2.msra.mxu0 0.0
      %735 = vmatprep.subr.mxu0 0.0
      %736 = vmatpush2.msra.mxu0 0.0
      %737 = vmatprep.subr.mxu0 0.0
      %738 = vmatpush2.msra.mxu0 0.0
      %739 = vmatprep.subr.mxu0 0.0
      %740 = vmatpush2.msra.mxu0 0.0
      %741 = vmatprep.subr.mxu0 0.0
      %742 = vmatpush2.msra.mxu0 0.0
      %743 = vmatprep.subr.mxu0 0.0
      %744 = vmatpush2.msra.mxu0 0.0
      %745 = vmatprep.subr.mxu0 0.0
      %746 = vmatpush2.msra.mxu0 0.0
      %747 = vmatprep.subr.mxu0 0.0
      %748 = vmatpush2.msra.mxu0 0.0
      %749 = vmatprep.subr.mxu0 0.0
      %750 = vmatpush2.msra.mxu0 0.0
      %751 = vmatprep.mubr.f32.mxu0 0.0
      %752 = vmatmul.mubr.f32.gmra.mxu0 %v685
      %v753 = vpop.f32.mrf.mxu0
      %v754 = vadd.f32 0.0, %v753
      %v755 = vpop.f32.mrf.mxu0
      %756 = vdwg.mxu0
      %757 = vmatprep.subr.mxu0 0.0
      %758 = vmatpush1.msra.mxu0 %v679
      %759 = vmatprep.subr.mxu0 0.0
      %760 = vmatpush1.msra.mxu0 %v678
      %761 = vmatprep.subr.mxu0 0.0
      %762 = vmatpush1.msra.mxu0 %v677
      %763 = vmatprep.subr.mxu0 0.0
      %764 = vmatpush1.msra.mxu0 %v676
      %765 = vmatprep.subr.mxu0 0.0
      %766 = vmatpush1.msra.mxu0 %v675
      %767 = vmatprep.subr.mxu0 0.0
      %768 = vmatpush1.msra.mxu0 %v674
      %769 = vmatprep.subr.mxu0 0.0
      %770 = vmatpush1.msra.mxu0 %v673
      %771 = vmatprep.subr.mxu0 0.0
      %772 = vmatpush1.msra.mxu0 %v672
      %773 = vmatprep.subr.mxu0 0.0
      %774 = vmatpush1.msra.mxu0 %v671
      %775 = vmatprep.subr.mxu0 0.0
      %776 = vmatpush1.msra.mxu0 %v670
      %777 = vmatprep.subr.mxu0 0.0
      %778 = vmatpush1.msra.mxu0 %v669
      %779 = vmatprep.subr.mxu0 0.0
      %780 = vmatpush1.msra.mxu0 %v668
      %781 = vmatprep.subr.mxu0 0.0
      %782 = vmatpush1.msra.mxu0 %v667
      %783 = vmatprep.subr.mxu0 0.0
      %784 = vmatpush1.msra.mxu0 %v666
      %785 = vmatprep.subr.mxu0 0.0
      %786 = vmatpush1.msra.mxu0 %v665
      %787 = vmatprep.subr.mxu0 0.0
      %788 = vmatpush1.msra.mxu0 %v664
      %789 = vmatprep.subr.mxu0 0.0
      %790 = vmatpush2.msra.mxu0 0.0
      %791 = vmatprep.subr.mxu0 0.0
      %792 = vmatpush2.msra.mxu0 0.0
      %793 = vmatprep.subr.mxu0 0.0
      %794 = vmatpush2.msra.mxu0 0.0
      %795 = vmatprep.subr.mxu0 0.0
      %796 = vmatpush2.msra.mxu0 0.0
      %797 = vmatprep.subr.mxu0 0.0
      %798 = vmatpush2.msra.mxu0 0.0
      %799 = vmatprep.subr.mxu0 0.0
      %800 = vmatpush2.msra.mxu0 0.0
      %801 = vmatprep.subr.mxu0 0.0
      %802 = vmatpush2.msra.mxu0 0.0
      %803 = vmatprep.subr.mxu0 0.0
      %804 = vmatpush2.msra.mxu0 0.0
      %805 = vmatprep.subr.mxu0 0.0
      %806 = vmatpush2.msra.mxu0 0.0
      %807 = vmatprep.subr.mxu0 0.0
      %808 = vmatpush2.msra.mxu0 0.0
      %809 = vmatprep.subr.mxu0 0.0
      %810 = vmatpush2.msra.mxu0 0.0
      %811 = vmatprep.subr.mxu0 0.0
      %812 = vmatpush2.msra.mxu0 0.0
      %813 = vmatprep.subr.mxu0 0.0
      %814 = vmatpush2.msra.mxu0 0.0
      %815 = vmatprep.subr.mxu0 0.0
      %816 = vmatpush2.msra.mxu0 0.0
      %817 = vmatprep.subr.mxu0 0.0
      %818 = vmatpush2.msra.mxu0 0.0
      %819 = vmatprep.subr.mxu0 0.0
      %820 = vmatpush2.msra.mxu0 0.0
      %821 = vmatprep.mubr.f32.mxu0 0.0
      %822 = vmatmul.mubr.f32.gmra.mxu0 %v661
      %v823 = vpop.f32.mrf.mxu0
      %v824 = vadd.f32 %v754, %v823
      %v825 = vpop.f32.mrf.mxu0
      %826 = vdwg.mxu0
      %v827 = vld [vmem:[%s9] sm:$0x1]
      %v829 = vlaneseq
      %v830 = vshrl.u32 %v829, 7
      %v831 = vsub.s32 0, %v830
      %v832 = vrot.slane %v827, %v831
      %v834 = vadd.f32 %v824, %v832
      %v835 = vxor.u32 %v834, 2147483648
      %v836 = vmul.f32 %v835, 1.442695
      %v837 = vpow.pop %v836
      %v838 = vadd.f32 %v837, 1.0
      %v839 = vrcp.pop %v838
      %v840 = vmul.f32 1.0, %v839
      %v841 = vtanh.pop %v834
      %843 = vrot.lane.b32.xlu0 %v485, 32
      %v844 = vpop.permute.xlu0 %843
      %v846 = vmul.f32 %v840, %v844
      %848 = vrot.lane.b32.xlu0 %v841, 32
      %v849 = vpop.permute.xlu0 %848
      %v851 = vmul.f32 %v840, %v849
      %853 = vrot.lane.b32.xlu0 %v851, 32
      %v854 = vpop.permute.xlu0 %853
      %v856 = vadd.f32 %v846, %v854
      %858 = vrot.lane.b32.xlu0 %v856, 32
      %v859 = vpop.permute.xlu0 %858
      %v861 = vmul.f32 %v840, %v859
      %863 = vrot.lane.b32.xlu0 %v861, 64
      %v864 = vpop.permute.xlu0 %863
      %vm866 = vcmask 254976
      %867 = vst.msk [vmem:[#allocation2] sm:$0x3] %vm866, %v864
      %868 = vrot.lane.b32.xlu0 %v856, 96
      %v869 = vpop.permute.xlu0 %868
      %871 = vst.msk [vmem:[#allocation3] sm:$0x3] %vm866, %v869
      %v872 = vld [vmem:[%s10] sm:$0xff]
      %v873 = vld [vmem:[%s10 + $0x8] sm:$0xff]
      %v874 = vld [vmem:[%s10 + $0x10] sm:$0xff]
      %v875 = vld [vmem:[%s10 + $0x18] sm:$0xff]
      %v876 = vld [vmem:[%s11] sm:$0x1]
      %v878 = vlaneseq
      %v879 = vshrl.u32 %v878, 7
      %v880 = vsub.s32 0, %v879
      %v881 = vrot.slane %v876, %v880
      %v883 = vsel %vm497, %v864, 0
      %885 = vmatprep.subr.mxu0 0.0
      %886 = vmatpush1.msra.mxu0 0.0
      %887 = vmatprep.subr.mxu0 0.0
      %888 = vmatpush1.msra.mxu0 0.0
      %889 = vmatprep.subr.mxu0 0.0
      %890 = vmatpush1.msra.mxu0 0.0
      %891 = vmatprep.subr.mxu0 0.0
      %892 = vmatpush1.msra.mxu0 0.0
      %893 = vmatprep.subr.mxu0 0.0
      %894 = vmatpush1.msra.mxu0 0.0
      %895 = vmatprep.subr.mxu0 0.0
      %896 = vmatpush1.msra.mxu0 0.0
      %897 = vmatprep.subr.mxu0 0.0
      %898 = vmatpush1.msra.mxu0 0.0
      %899 = vmatprep.subr.mxu0 0.0
      %900 = vmatpush1.msra.mxu0 0.0
      %901 = vmatprep.subr.mxu0 0.0
      %902 = vmatpush1.msra.mxu0 0.0
      %903 = vmatprep.subr.mxu0 0.0
      %904 = vmatpush1.msra.mxu0 0.0
      %905 = vmatprep.subr.mxu0 0.0
      %906 = vmatpush1.msra.mxu0 0.0
      %907 = vmatprep.subr.mxu0 0.0
      %908 = vmatpush1.msra.mxu0 0.0
      %909 = vmatprep.subr.mxu0 0.0
      %910 = vmatpush1.msra.mxu0 %v875
      %911 = vmatprep.subr.mxu0 0.0
      %912 = vmatpush1.msra.mxu0 %v874
      %913 = vmatprep.subr.mxu0 0.0
      %914 = vmatpush1.msra.mxu0 %v873
      %915 = vmatprep.subr.mxu0 0.0
      %916 = vmatpush1.msra.mxu0 %v872
      %917 = vmatprep.subr.mxu0 0.0
      %918 = vmatpush2.msra.mxu0 0.0
      %919 = vmatprep.subr.mxu0 0.0
      %920 = vmatpush2.msra.mxu0 0.0
      %921 = vmatprep.subr.mxu0 0.0
      %922 = vmatpush2.msra.mxu0 0.0
      %923 = vmatprep.subr.mxu0 0.0
      %924 = vmatpush2.msra.mxu0 0.0
      %925 = vmatprep.subr.mxu0 0.0
      %926 = vmatpush2.msra.mxu0 0.0
      %927 = vmatprep.subr.mxu0 0.0
      %928 = vmatpush2.msra.mxu0 0.0
      %929 = vmatprep.subr.mxu0 0.0
      %930 = vmatpush2.msra.mxu0 0.0
      %931 = vmatprep.subr.mxu0 0.0
      %932 = vmatpush2.msra.mxu0 0.0
      %933 = vmatprep.subr.mxu0 0.0
      %934 = vmatpush2.msra.mxu0 0.0
      %935 = vmatprep.subr.mxu0 0.0
      %936 = vmatpush2.msra.mxu0 0.0
      %937 = vmatprep.subr.mxu0 0.0
      %938 = vmatpush2.msra.mxu0 0.0
      %939 = vmatprep.subr.mxu0 0.0
      %940 = vmatpush2.msra.mxu0 0.0
      %941 = vmatprep.subr.mxu0 0.0
      %942 = vmatpush2.msra.mxu0 0.0
      %943 = vmatprep.subr.mxu0 0.0
      %944 = vmatpush2.msra.mxu0 0.0
      %945 = vmatprep.subr.mxu0 0.0
      %946 = vmatpush2.msra.mxu0 0.0
      %947 = vmatprep.subr.mxu0 0.0
      %948 = vmatpush2.msra.mxu0 0.0
      %949 = vmatprep.mubr.f32.mxu0 0.0
      %950 = vmatmul.mubr.f32.gmra.mxu0 %v883
      %v951 = vpop.f32.mrf.mxu0
      %v952 = vadd.f32 %v881, %v951
      %v953 = vpop.f32.mrf.mxu0
      %954 = vdwg.mxu0
      %955 = vst [vmem:[%s473] sm:$0x3] %v952
      %p956 = scmp.lt.s32.totalorder %s28, 7
      %s957 = scalar_select %p956, %s28, 7
      %p958 = scmp.lt.s32.totalorder %s27, 0
      %s959 = scalar_select %p958, %s27, 0
      %s960 = sadd.s32 %s959, %s957
      %s961 = smul.addr %s960, 2
      %s962 = scalar_lea.vmem %s12, %s961
      // Predicated region
      $region73: #{factored_lstm_forward.1} parent=67 // pred_check
        %p963 = pneg %p324
      $region74: #{factored_lstm_forward.1} parent=67 // pred_check_branch
        %965 = sbr.rel (%p963) target = $region76
      $region75: #{factored_lstm_forward.1} parent=67 // pred_region
        _
      $region76: #{factored_lstm_forward.1} parent=67 // pred_fallthru
        _
    $region68: #{factored_lstm_forward.1} parent=5 // pred_fallthru
      _
    %p966 = scmp.le.s32.totalorder 2, %s18
    // Predicated region
    $region77: #{factored_lstm_forward.1} parent=5 // pred_check
      %p967 = pneg %p966
    $region78: #{factored_lstm_forward.1} parent=5 // pred_check_branch
      %969 = sbr.rel (%p967) target = $region80
    $region79: #{factored_lstm_forward.1} parent=5 // pred_region
      %s970 = ssub.s32 %s18, 2
      // Predicated region
      $region81: #{factored_lstm_forward.1} parent=79 // pred_check
        %p971 = pneg %p330
      $region82: #{factored_lstm_forward.1} parent=79 // pred_check_branch
        %973 = sbr.rel (%p971) target = $region84
      $region83: #{factored_lstm_forward.1} parent=79 // pred_region
        %p974 = scmp.lt.s32.totalorder %s30, 7
        %s975 = scalar_select %p974, %s30, 7
        %p976 = scmp.lt.s32.totalorder %s29, 0
        %s977 = scalar_select %p976, %s29, 0
        %s978 = sadd.s32 %s977, %s975
        %s979 = smul.addr %s978, 2
        %s980 = scalar_lea.vmem %s12, %s979
      $region84: #{factored_lstm_forward.1} parent=79 // pred_fallthru
        _
    $region80: #{factored_lstm_forward.1} parent=5 // pred_fallthru
      _
  $region6: #{factored_lstm_forward.1} parent=0 // loop_footer
    %s22 = sadd.s32 1, %s18
  $region7: #{factored_lstm_forward.1} parent=0 // loop_footer_branch
    %17 = sbr.rel target = $region3
  $region8: #{factored_lstm_forward.1} parent=0 // loop_exit
    _

</llo_original>
